<compile_context>
chip_gen: v7x
topology: tpu7x:2x2x1
jax: 0.10.0
libtpu: 0.0.40
codegen_flags: <defaults>
</compile_context>

<pallas_src>
import jax
import jax.numpy as jnp
import numpy as np
from jax.experimental import pallas as pl
from jax.experimental.pallas import tpu as pltpu

_LANE = 128
_TARGET_BLOCK_BYTES = 2 * 1024 * 1024  # per-operand block budget (safe for v5e/v7x scoped VMEM)


def _round_up(x, m):
    return ((x + m - 1) // m) * m


def _drop_path_kernel(scale_ref, x_ref, o_ref):
    """scale_ref: (B, 1) per-sample multiplier (0 or 1/keep_prob), native dtype.
    x_ref / o_ref: (B, N_TILE) lane-dense tiles."""
    o_ref[...] = x_ref[...] * scale_ref[...]


def grounded_audio_drop_path(hidden_states, drop_prob=0.0, *, training=False,
                             key=None, seed=0):
    """Stochastic-depth forward. hidden_states: (B, ...). Returns same shape/dtype."""
    if drop_prob == 0.0 or not training:
        return hidden_states  # identity fast path (no kernel)

    keep_prob = 1.0 - drop_prob
    B = hidden_states.shape[0]
    N = int(np.prod(hidden_states.shape[1:]))
    dtype = hidden_states.dtype
    itemsize = jnp.dtype(dtype).itemsize

    # Per-sample Bernoulli(keep_prob) scale, computed once outside the kernel and
    # broadcast to every tile inside it. Matches torch drop_path:
    #   keep  <=>  floor(keep_prob + U) == 1  <=>  U >= drop_prob.
    if key is None:
        key = jax.random.PRNGKey(seed)
    u = jax.random.uniform(key, (B, 1), dtype=jnp.float32)
    scale = jnp.where(u >= jnp.float32(drop_prob),
                      jnp.float32(1.0 / keep_prob),
                      jnp.float32(0.0)).astype(dtype)

    # Lane-dense layout: flatten features, pick a 128-multiple tile, pad N so the
    # grid divides evenly and every store is a full-width vst.
    x2d = hidden_states.reshape(B, N)
    max_lanes = max(_LANE,
                    (_TARGET_BLOCK_BYTES // max(B * itemsize, 1)) // _LANE * _LANE)
    n_tile = min(_round_up(N, _LANE), max_lanes)
    n_pad = _round_up(N, n_tile)
    if n_pad != N:
        x2d = jnp.pad(x2d, ((0, 0), (0, n_pad - N)))
    grid = (n_pad // n_tile,)

    out2d = pl.pallas_call(
        _drop_path_kernel,
        out_shape=jax.ShapeDtypeStruct((B, n_pad), dtype),
        grid=grid,
        in_specs=[
            pl.BlockSpec((B, 1), lambda i: (0, 0)),        # per-sample scale (broadcast)
            pl.BlockSpec((B, n_tile), lambda i: (0, i)),   # input tile
        ],
        out_specs=pl.BlockSpec((B, n_tile), lambda i: (0, i)),
        input_output_aliases={1: 0},                        # drop-path is naturally in-place
        cost_estimate=pl.CostEstimate(
            flops=B * n_pad,
            transcendentals=0,
            bytes_accessed=2 * B * n_pad * itemsize + B * itemsize),
        compiler_params=pltpu.CompilerParams(
            dimension_semantics=("parallel",)),
    )(scale, x2d)

    if n_pad != N:
        out2d = out2d[:, :N]
    return out2d.reshape(hidden_states.shape)


if __name__ == "__main__":
    key = jax.random.PRNGKey(0)
    B, C, H, W = 2, 4, 16, 16
    hidden_states = jax.random.normal(key, (B, C, H, W), dtype=jnp.float32)

    drop_prob = 0.25
    keep_prob = 1.0 - drop_prob

    out = grounded_audio_drop_path(hidden_states, drop_prob, training=True, seed=0)
    out = jax.block_until_ready(out)
    assert out.shape == hidden_states.shape, out.shape
    assert out.dtype == hidden_states.dtype, out.dtype

    x_np = np.asarray(jax.device_get(hidden_states))
    out_np = np.asarray(jax.device_get(out))

    # Structural check (holds for any RNG draw): each sample is either exactly
    # scaled by 1/keep_prob (kept) or zeroed (dropped), uniformly per sample.
    for b in range(B):
        kept = np.allclose(out_np[b], x_np[b] / keep_prob, rtol=1e-5, atol=1e-5)
        dropped = np.allclose(out_np[b], 0.0, atol=1e-7)
        assert kept or dropped, f"sample {b}: invalid drop-path output"

    # Identity paths: eval mode and drop_prob == 0 return the input unchanged.
    out_eval = grounded_audio_drop_path(hidden_states, drop_prob, training=False)
    assert np.array_equal(np.asarray(jax.device_get(out_eval)), x_np)
    out_p0 = grounded_audio_drop_path(hidden_states, 0.0, training=True)
    assert np.array_equal(np.asarray(jax.device_get(out_p0)), x_np)

    # Non-128-multiple feature size exercises the padding path.
    hs_odd = jax.random.normal(jax.random.PRNGKey(1), (2, 3, 5, 7), dtype=jnp.float32)
    out_odd = jax.block_until_ready(
        grounded_audio_drop_path(hs_odd, drop_prob, training=True, seed=3))
    x_odd = np.asarray(jax.device_get(hs_odd))
    o_odd = np.asarray(jax.device_get(out_odd))
    for b in range(2):
        kept = np.allclose(o_odd[b], x_odd[b] / keep_prob, rtol=1e-5, atol=1e-5)
        dropped = np.allclose(o_odd[b], 0.0, atol=1e-7)
        assert kept or dropped, f"odd-shape sample {b}: invalid drop-path output"

    print("KERNEL_OK")
</pallas_src>

<mosaic_0001>
module attributes {stable_mosaic.version = 11 : i64} {
  func.func @_drop_path_kernel(%arg0: i32, %arg1: memref<2x1xf32, #tpu.memory_space<vmem>>, %arg2: memref<2x1024xf32, #tpu.memory_space<vmem>>, %arg3: memref<2x1024xf32, #tpu.memory_space<vmem>>) attributes {dimension_semantics = [#tpu.dimension_semantics<parallel>], iteration_bounds = array<i64: 1>, scalar_prefetch = 0 : i64, scratch_operands = 0 : i64, tpu.core_type = #tpu.core_type<tc>, window_params = [{pipeline_mode = #tpu.pipeline_mode<synchronous>, transform_indices = @transform_0, window_bounds = array<i64: 2, 1>}, {transform_indices = @transform_1, window_bounds = array<i64: 2, 1024>}, {transform_indices = @transform_2, window_bounds = array<i64: 2, 1024>}]} {
    %c0 = arith.constant 0 : index
    %c0_0 = arith.constant 0 : index
    %0 = vector.load %arg2[%c0, %c0_0] : memref<2x1024xf32, #tpu.memory_space<vmem>>, vector<2x1024xf32>
    %c0_1 = arith.constant 0 : index
    %c0_2 = arith.constant 0 : index
    %1 = vector.load %arg1[%c0_1, %c0_2] : memref<2x1xf32, #tpu.memory_space<vmem>>, vector<2x1xf32>
    %2 = vector.broadcast %1 : vector<2x1xf32> to vector<2x1024xf32>
    %3 = arith.mulf %0, %2 : vector<2x1024xf32>
    %c0_3 = arith.constant 0 : index
    %c0_4 = arith.constant 0 : index
    %4 = vector.load %arg3[%c0_3, %c0_4] : memref<2x1024xf32, #tpu.memory_space<vmem>>, vector<2x1024xf32>
    tpu.vector_store %arg3[%c0_3, %c0_4], %3 {strides = array<i32>} : memref<2x1024xf32, #tpu.memory_space<vmem>>, vector<2x1024xf32>,
    return
  }
  func.func @transform_0(%arg0: i32) -> (i32, i32) {
    %c0_i32 = arith.constant 0 : i32
    %c0_i32_0 = arith.constant 0 : i32
    %c0_i32_1 = arith.constant 0 : i32
    return %c0_i32, %c0_i32_0 : i32, i32
  }
  func.func @transform_1(%arg0: i32) -> (i32, i32) {
    %c0_i32 = arith.constant 0 : i32
    %c0_i32_0 = arith.constant 0 : i32
    return %c0_i32, %arg0 : i32, i32
  }
  func.func @transform_2(%arg0: i32) -> (i32, i32) {
    %c0_i32 = arith.constant 0 : i32
    %c0_i32_0 = arith.constant 0 : i32
    return %c0_i32, %arg0 : i32, i32
  }
}

</mosaic_0001>

<llo_original>
// kernel: tpu_custom_call.1
$region0: #{tpu_custom_call.1}
  #allocation0 [shape = 'u32[]', space=smem, size = 0x4, offset = 0x4, fixed_abs, tag = 'smem constant byte address 0x4 - core index']
  #allocation1 [shape = 'u32[144,128]{1,0:T(1,128)}', space=vmem, size = 0x12000, scoped, tag = 'internal scratch']
  %s0 = inlined_call_operand.vmem [shape: f32[2,1], index: 0, kind: input, shape index: {}]
  %s1 = inlined_call_operand.hbm [shape: f32[2,1024], index: 1, kind: input, shape index: {}, may-alias: {1,2}]
  %s2 = inlined_call_operand.hbm [shape: f32[2,1024], index: 2, kind: output, shape index: {}, may-alias: {1,2}]
  %s3 = sld [smem:[#allocation0]]
  $region22: #{tpu_custom_call.1} parent=0
    _
  %s5 = ssub.s32 1, %s3
  %s6 = scalar_select 0, %s5, %s3
  $region1: #{tpu_custom_call.1} parent=0
    #allocation2 [shape = 'u8[8192]{0}', space=vmem, size = 0x2000, scoped, tag = 'input window, operand 1, single buffered']
    #allocation3 [shape = 's32[1]{0}', space=sflag, size = 0x4, scoped, tag = 'scoped memory for tpu_custom_call.1']
    #allocation4 [shape = 's32[1]{0}', space=sflag, size = 0x4, scoped, tag = 'scoped memory for tpu_custom_call.1']
    #allocation5 [shape = 'u8[8192]{0}', space=vmem, size = 0x2000, scoped, tag = 'output window, operand 0, single buffered']
    %7 = vsyncpa [#allocation3], 0
    %8 = vsyncpa [#allocation4], 0
    // Predicated region
    $region2: #{tpu_custom_call.1} parent=1 // pred_check
      _
    $region3: #{tpu_custom_call.1} parent=1 // pred_check_branch
      %10 = sbr.rel (0) target = $region5
    $region4: #{tpu_custom_call.1} parent=1 // pred_region
      _
    $region5: #{tpu_custom_call.1} parent=1 // pred_fallthru
      _
    // Predicated region
    $region6: #{tpu_custom_call.1} parent=1 // pred_check
      _
    $region7: #{tpu_custom_call.1} parent=1 // pred_check_branch
      %12 = sbr.rel (0) target = $region9
    $region8: #{tpu_custom_call.1} parent=1 // pred_region
      %s14 = ssub.s32 256, 256
      %15 = vsyncadd [#allocation3], %s14
      %s17 = sshll.u32 [#allocation2], 4
      %s18 = int_to_ptr.vmem [resolvable:$true] %s17
      %20 = dma.hbm_to_vmem [thread:$0]  %s1, 256, %s18, [#allocation3]
    $region9: #{tpu_custom_call.1} parent=1 // pred_fallthru
      _
    // Predicated region
    $region10: #{tpu_custom_call.1} parent=1 // pred_check
      _
    $region11: #{tpu_custom_call.1} parent=1 // pred_check_branch
      %22 = sbr.rel (0) target = $region13
    $region12: #{tpu_custom_call.1} parent=1 // pred_region
      %23 = dma.done [#allocation3], 256
    $region13: #{tpu_custom_call.1} parent=1 // pred_fallthru
      _
    %v24 = vld [vmem:[#allocation2] sm:$0xff]
    %v25 = vld [vmem:[#allocation2 + $0x8] sm:$0xff]
    %v26 = vld [vmem:[%s0] sm:$0x3]
    %28 = vset.pattern.permute.xlu0 0
    %29 = vperm.xlu0 %28, %v26
    %v30 = vpop.permute.xlu0 %29
    %v32 = vunpack.c.l.s4 269488144
    %v33 = vunpack.c.0.s8 %v32
    %v34 = vlaneseq
    %v35 = vshrl.u32 %v34, 7
    %v36 = vsub.s32 %v33, %v35
    %v37 = vrot.slane %v30, %v36
    %v39 = vmul.f32 %v24, %v37
    %v40 = vmul.f32 %v25, %v37
    %41 = vst [vmem:[#allocation5] sm:$0xff] %v39
    %42 = vst [vmem:[#allocation5 + $0x8] sm:$0xff] %v40
    // Predicated region
    $region14: #{tpu_custom_call.1} parent=1 // pred_check
      _
    $region15: #{tpu_custom_call.1} parent=1 // pred_check_branch
      %44 = sbr.rel (0) target = $region17
    $region16: #{tpu_custom_call.1} parent=1 // pred_region
      %s46 = ssub.s32 256, 256
      %47 = vsyncadd [#allocation4], %s46
      %s49 = sshll.u32 [#allocation5], 4
      %s50 = int_to_ptr.vmem [resolvable:$true] %s49
      %52 = dma.vmem_to_hbm [thread:$0]  %s50, 256, %s2, [#allocation4]
    $region17: #{tpu_custom_call.1} parent=1 // pred_fallthru
      _
    // Predicated region
    $region18: #{tpu_custom_call.1} parent=1 // pred_check
      _
    $region19: #{tpu_custom_call.1} parent=1 // pred_check_branch
      %54 = sbr.rel (0) target = $region21
    $region20: #{tpu_custom_call.1} parent=1 // pred_region
      %55 = dma.done [#allocation4], 256
    $region21: #{tpu_custom_call.1} parent=1 // pred_fallthru
      _
    %56 = vsyncpa [#allocation3], 1
    %57 = vsyncpa [#allocation4], 1

</llo_original>
